<compile_context>
chip_gen: v5e
topology: v5e:2x2
jax: 0.10.0
libtpu: 0.0.40
codegen_flags: <defaults>
</compile_context>

<pallas_src>
import jax
import jax.numpy as jnp
from jax.experimental import pallas as pl
from jax.experimental.pallas import tpu as pltpu

_BN_EPS = 1e-5
_LANE = 128
_SUBLANE = 8


def _round_up(n, m):
    return ((n + m - 1) // m) * m


# ---------------------------------------------------------------------------
# Kernel: one (branch, batch-tile) grid point.
#   x_ref  : (TM, K_pad)      activation tile (branch dim squeezed)
#   w1_ref : (K_pad, H_pad)   BN1/BN2-folded first Linear
#   b1_ref : (1, H_pad)       folded bias (f32)
#   w2_ref : (H_pad, C_pad)   second Linear
#   b2_ref : (1, C_pad)       bias (f32)
#   out_ref: (TM, C_pad)      lane-dense logits tile
# ---------------------------------------------------------------------------
def _classifier_2fc_kernel(x_ref, w1_ref, b1_ref, w2_ref, b2_ref, out_ref):
    h = jnp.dot(x_ref[...], w1_ref[...], preferred_element_type=jnp.float32)
    h = jnp.maximum(h + b1_ref[...], 0.0)          # bias + ReLU in f32 on the VPU
    out = jnp.dot(h.astype(w2_ref.dtype), w2_ref[...],
                  preferred_element_type=jnp.float32) + b2_ref[...]
    out_ref[...] = out.astype(out_ref.dtype)


# ---------------------------------------------------------------------------
# One-time precompute: fold BN into the Linears, pad, stack all branches.
# ---------------------------------------------------------------------------
def fold_and_pack_params(params, *, compute_dtype=jnp.float32):
    in_dims = [p["w1"].shape[0] for p in params]
    hid_dim = params[0]["w1"].shape[1]
    class_num = params[0]["w2"].shape[1]

    k_pad = _round_up(max(in_dims), _LANE)
    h_pad = _round_up(hid_dim, _LANE)
    c_pad = _round_up(class_num, _LANE)

    w1s, b1s, w2s, b2s = [], [], [], []
    for p in params:
        # BN(in): y = x*s1 + c1 ;  BN(hid): y = h*s2 + c2   (eval-mode running stats)
        s1 = p["bn1_gamma"] * jax.lax.rsqrt(p["bn1_var"] + _BN_EPS)   # (1, in)
        c1 = p["bn1_beta"] - p["bn1_mean"] * s1
        s2 = p["bn2_gamma"] * jax.lax.rsqrt(p["bn2_var"] + _BN_EPS)   # (1, hid)
        c2 = p["bn2_beta"] - p["bn2_mean"] * s2

        # h_bn = (x*s1 + c1) @ W1 * s2 + (b1*s2 + c2)
        w1f = (s1.reshape(-1, 1) * p["w1"]) * s2                      # (in, hid)
        b1f = (c1 @ p["w1"] + p["b1"]) * s2 + c2                      # (1, hid)

        d_in = w1f.shape[0]
        w1s.append(jnp.pad(w1f, ((0, k_pad - d_in), (0, h_pad - hid_dim))))
        b1s.append(jnp.pad(b1f, ((0, 0), (0, h_pad - hid_dim))))
        w2s.append(jnp.pad(p["w2"], ((0, h_pad - hid_dim), (0, c_pad - class_num))))
        b2s.append(jnp.pad(p["b2"], ((0, 0), (0, c_pad - class_num))))

    return {
        "w1": jnp.stack(w1s).astype(compute_dtype),   # (S, K_pad, H_pad)
        "b1": jnp.stack(b1s).astype(jnp.float32),     # (S, 1, H_pad)
        "w2": jnp.stack(w2s).astype(compute_dtype),   # (S, H_pad, C_pad)
        "b2": jnp.stack(b2s).astype(jnp.float32),     # (S, 1, C_pad)
        "in_dims": tuple(in_dims),
        "class_num": class_num,
    }


def _pack_inputs(inputs, k_pad, b_pad, dtype):
    xs = []
    for x in inputs:
        b, d = x.shape
        xs.append(jnp.pad(x, ((0, b_pad - b), (0, k_pad - d))))
    return jnp.stack(xs).astype(dtype)                # (S, B_pad, K_pad)


# ---------------------------------------------------------------------------
# Fused forward over all branches via a single pallas_call.
# ---------------------------------------------------------------------------
def classifier_2fc_apply(inputs, packed, *, batch_tile=512):
    num_branches = packed["w1"].shape[0]
    assert len(inputs) == num_branches
    batch = inputs[0].shape[0]

    k_pad = packed["w1"].shape[1]
    h_pad = packed["w1"].shape[2]
    c_pad = packed["w2"].shape[2]
    compute_dtype = packed["w1"].dtype
    itemsize = jnp.dtype(compute_dtype).itemsize

    tm = min(_round_up(batch, _SUBLANE), batch_tile)
    b_pad = _round_up(batch, tm)

    x_stk = _pack_inputs(inputs, k_pad, b_pad, compute_dtype)

    grid = (num_branches, b_pad // tm)

    flops = 2 * num_branches * b_pad * (k_pad * h_pad + h_pad * c_pad)
    bytes_accessed = (
        x_stk.size * itemsize
        + packed["w1"].size * itemsize + packed["w2"].size * itemsize
        + packed["b1"].size * 4 + packed["b2"].size * 4
        + num_branches * b_pad * c_pad * 4
    )

    # VMEM budget: double-buffered activation/output tiles + per-branch weights.
    tile_bytes = 2 * (tm * k_pad * itemsize + tm * c_pad * 4)
    wt_bytes = 2 * (k_pad * h_pad * itemsize + h_pad * c_pad * itemsize
                    + h_pad * 4 + c_pad * 4)
    vmem_limit = min(max(int(1.5 * (tile_bytes + wt_bytes)), 32 * 1024 * 1024),
                     64 * 1024 * 1024)

    out = pl.pallas_call(
        _classifier_2fc_kernel,
        out_shape=jax.ShapeDtypeStruct((num_branches, b_pad, c_pad), jnp.float32),
        grid_spec=pltpu.PrefetchScalarGridSpec(
            num_scalar_prefetch=0,
            grid=grid,
            in_specs=[
                pl.BlockSpec((None, tm, k_pad),    lambda s, i: (s, i, 0)),
                pl.BlockSpec((None, k_pad, h_pad), lambda s, i: (s, 0, 0)),
                pl.BlockSpec((None, 1, h_pad),     lambda s, i: (s, 0, 0)),
                pl.BlockSpec((None, h_pad, c_pad), lambda s, i: (s, 0, 0)),
                pl.BlockSpec((None, 1, c_pad),     lambda s, i: (s, 0, 0)),
            ],
            out_specs=pl.BlockSpec((None, tm, c_pad), lambda s, i: (s, i, 0)),
        ),
        compiler_params=pltpu.CompilerParams(
            dimension_semantics=("parallel", "parallel"),
            vmem_limit_bytes=vmem_limit,
        ),
        cost_estimate=pl.CostEstimate(
            flops=flops, transcendentals=0, bytes_accessed=bytes_accessed),
    )(x_stk, packed["w1"], packed["b1"], packed["w2"], packed["b2"])

    class_num = packed["class_num"]
    outputs = [out[s, :batch, :class_num] for s in range(num_branches)]
    return tuple(outputs) if len(outputs) > 1 else outputs[0]


def classifier_2fc_forward(inputs, params, *, compute_dtype=jnp.float32,
                           batch_tile=512):
    """Mirror of Classifier_2FC.forward: list of inputs -> tuple (or single) logits."""
    packed = fold_and_pack_params(params, compute_dtype=compute_dtype)
    return classifier_2fc_apply(inputs, packed, batch_tile=batch_tile)


# ---------------------------------------------------------------------------
# Synthetic parameters + pure-JAX reference (unfolded BN math) for checking.
# ---------------------------------------------------------------------------
def init_classifier_2fc_params(key, in_dim, hid_dim, class_num):
    params = []
    for s, d_in in enumerate(in_dim):
        ks = jax.random.split(jax.random.fold_in(key, s), 8)
        p = {
            "bn1_gamma": jax.random.uniform(ks[0], (1, d_in), jnp.float32, 0.5, 1.5),
            "bn1_beta":  0.1 * jax.random.normal(ks[1], (1, d_in), jnp.float32),
            "bn1_mean":  0.1 * jax.random.normal(ks[2], (1, d_in), jnp.float32),
            "bn1_var":   jax.random.uniform(ks[3], (1, d_in), jnp.float32, 0.5, 1.5),
            "w1": (jax.random.normal(ks[4], (d_in, hid_dim), jnp.float32)
                   / jnp.sqrt(jnp.float32(d_in))),
            "b1": 0.1 * jax.random.normal(ks[5], (1, hid_dim), jnp.float32),
            "bn2_gamma": jax.random.uniform(ks[6], (1, hid_dim), jnp.float32, 0.5, 1.5),
            "bn2_beta":  0.1 * jax.random.normal(ks[7], (1, hid_dim), jnp.float32),
            "bn2_mean":  jnp.zeros((1, hid_dim), jnp.float32),
            "bn2_var":   jnp.ones((1, hid_dim), jnp.float32),
            "w2": (jax.random.normal(jax.random.fold_in(ks[4], 1),
                                     (hid_dim, class_num), jnp.float32)
                   / jnp.sqrt(jnp.float32(hid_dim))),
            "b2": 0.1 * jax.random.normal(jax.random.fold_in(ks[5], 1),
                                          (1, class_num), jnp.float32),
        }
        params.append(p)
    return params


def _reference_forward(inputs, params):
    outs = []
    for x, p in zip(inputs, params):
        xb = ((x - p["bn1_mean"]) * jax.lax.rsqrt(p["bn1_var"] + _BN_EPS)
              * p["bn1_gamma"] + p["bn1_beta"])
        h = xb @ p["w1"] + p["b1"]
        hb = ((h - p["bn2_mean"]) * jax.lax.rsqrt(p["bn2_var"] + _BN_EPS)
              * p["bn2_gamma"] + p["bn2_beta"])
        outs.append(jnp.maximum(hb, 0.0) @ p["w2"] + p["b2"])
    return tuple(outs) if len(outs) > 1 else outs[0]


if __name__ == "__main__":
    key = jax.random.PRNGKey(0)

    # Small shapes consistent with the module: two classifier branches.
    in_dim = [32, 16]
    hid_dim = 32
    class_num = 10
    batch = 8

    params = init_classifier_2fc_params(key, in_dim, hid_dim, class_num)

    k_in = jax.random.split(jax.random.fold_in(key, 123), len(in_dim))
    inputs = [jax.random.normal(k_in[s], (batch, in_dim[s]), jnp.float32)
              for s in range(len(in_dim))]

    # f32 MXU operands here so the strict reference tolerance holds;
    # pass compute_dtype=jnp.bfloat16 on v6e/v7x for 2x MXU / half the DMA.
    outputs = classifier_2fc_forward(inputs, params, compute_dtype=jnp.float32)
    outputs = jax.block_until_ready(outputs)

    refs = _reference_forward(inputs, params)
    for o, r in zip(outputs, refs):
        assert o.shape == (batch, class_num)
        assert jnp.allclose(o, r, atol=1e-3, rtol=1e-3), "mismatch vs reference"

    print("KERNEL_OK")
</pallas_src>

<mosaic_0001>
module attributes {stable_mosaic.version = 11 : i64} {
  func.func @_classifier_2fc_kernel(%arg0: i32, %arg1: i32, %arg2: memref<1x8x128xf32, #tpu.memory_space<vmem>>, %arg3: memref<1x128x128xf32, #tpu.memory_space<vmem>>, %arg4: memref<1x1x128xf32, #tpu.memory_space<vmem>>, %arg5: memref<1x128x128xf32, #tpu.memory_space<vmem>>, %arg6: memref<1x1x128xf32, #tpu.memory_space<vmem>>, %arg7: memref<1x8x128xf32, #tpu.memory_space<vmem>>) attributes {dimension_semantics = [#tpu.dimension_semantics<parallel>, #tpu.dimension_semantics<parallel>], iteration_bounds = array<i64: 2, 1>, scalar_prefetch = 0 : i64, scratch_operands = 0 : i64, tpu.core_type = #tpu.core_type<tc>, window_params = [{transform_indices = @transform_0, window_bounds = array<i64: 1, 8, 128>}, {transform_indices = @transform_1, window_bounds = array<i64: 1, 128, 128>}, {transform_indices = @transform_2, window_bounds = array<i64: 1, 1, 128>}, {transform_indices = @transform_3, window_bounds = array<i64: 1, 128, 128>}, {transform_indices = @transform_4, window_bounds = array<i64: 1, 1, 128>}, {transform_indices = @transform_5, window_bounds = array<i64: 1, 8, 128>}]} {
    %c0 = arith.constant 0 : index
    %c0_0 = arith.constant 0 : index
    %c0_1 = arith.constant 0 : index
    %0 = vector.load %arg2[%c0, %c0_0, %c0_1] : memref<1x8x128xf32, #tpu.memory_space<vmem>>, vector<1x8x128xf32>
    %1 = vector.shape_cast %0 : vector<1x8x128xf32> to vector<8x128xf32>
    %c0_2 = arith.constant 0 : index
    %c0_3 = arith.constant 0 : index
    %c0_4 = arith.constant 0 : index
    %2 = vector.load %arg3[%c0_2, %c0_3, %c0_4] : memref<1x128x128xf32, #tpu.memory_space<vmem>>, vector<1x128x128xf32>
    %3 = vector.shape_cast %2 : vector<1x128x128xf32> to vector<128x128xf32>
    %cst = arith.constant dense<0.000000e+00> : vector<8x128xf32>
    %4 = tpu.matmul %1, %3, %cst {dimension_numbers = #tpu.dot_dimension_numbers<[1], [0], [0], [1], [0, 0, 1, 1], [], []>} : vector<8x128xf32>, vector<128x128xf32>, vector<8x128xf32> -> vector<8x128xf32>
    %c0_5 = arith.constant 0 : index
    %c0_6 = arith.constant 0 : index
    %c0_7 = arith.constant 0 : index
    %5 = vector.load %arg4[%c0_5, %c0_6, %c0_7] : memref<1x1x128xf32, #tpu.memory_space<vmem>>, vector<1x1x128xf32>
    %6 = vector.shape_cast %5 : vector<1x1x128xf32> to vector<1x128xf32>
    %7 = vector.broadcast %6 : vector<1x128xf32> to vector<8x128xf32>
    %8 = arith.addf %4, %7 : vector<8x128xf32>
    %cst_8 = arith.constant 0.000000e+00 : f32
    %9 = vector.broadcast %cst_8 : f32 to vector<8x128xf32>
    %10 = arith.maximumf %8, %9 : vector<8x128xf32>
    %c0_9 = arith.constant 0 : index
    %c0_10 = arith.constant 0 : index
    %c0_11 = arith.constant 0 : index
    %11 = vector.load %arg5[%c0_9, %c0_10, %c0_11] : memref<1x128x128xf32, #tpu.memory_space<vmem>>, vector<1x128x128xf32>
    %12 = vector.shape_cast %11 : vector<1x128x128xf32> to vector<128x128xf32>
    %cst_12 = arith.constant dense<0.000000e+00> : vector<8x128xf32>
    %13 = tpu.matmul %10, %12, %cst_12 {dimension_numbers = #tpu.dot_dimension_numbers<[1], [0], [0], [1], [0, 0, 1, 1], [], []>} : vector<8x128xf32>, vector<128x128xf32>, vector<8x128xf32> -> vector<8x128xf32>
    %c0_13 = arith.constant 0 : index
    %c0_14 = arith.constant 0 : index
    %c0_15 = arith.constant 0 : index
    %14 = vector.load %arg6[%c0_13, %c0_14, %c0_15] : memref<1x1x128xf32, #tpu.memory_space<vmem>>, vector<1x1x128xf32>
    %15 = vector.shape_cast %14 : vector<1x1x128xf32> to vector<1x128xf32>
    %16 = vector.broadcast %15 : vector<1x128xf32> to vector<8x128xf32>
    %17 = arith.addf %13, %16 : vector<8x128xf32>
    %c0_16 = arith.constant 0 : index
    %c0_17 = arith.constant 0 : index
    %c0_18 = arith.constant 0 : index
    %18 = vector.load %arg7[%c0_16, %c0_17, %c0_18] : memref<1x8x128xf32, #tpu.memory_space<vmem>>, vector<1x8x128xf32>
    %19 = vector.shape_cast %18 : vector<1x8x128xf32> to vector<8x128xf32>
    %20 = vector.shape_cast %17 : vector<8x128xf32> to vector<1x8x128xf32>
    tpu.vector_store %arg7[%c0_16, %c0_17, %c0_18], %20 {strides = array<i32>} : memref<1x8x128xf32, #tpu.memory_space<vmem>>, vector<1x8x128xf32>,
    return
  }
  func.func @transform_0(%arg0: i32, %arg1: i32) -> (i32, i32, i32) {
    %c0_i32 = arith.constant 0 : i32
    %c0_i32_0 = arith.constant 0 : i32
    return %arg0, %arg1, %c0_i32 : i32, i32, i32
  }
  func.func @transform_1(%arg0: i32, %arg1: i32) -> (i32, i32, i32) {
    %c0_i32 = arith.constant 0 : i32
    %c0_i32_0 = arith.constant 0 : i32
    %c0_i32_1 = arith.constant 0 : i32
    return %arg0, %c0_i32, %c0_i32_0 : i32, i32, i32
  }
  func.func @transform_2(%arg0: i32, %arg1: i32) -> (i32, i32, i32) {
    %c0_i32 = arith.constant 0 : i32
    %c0_i32_0 = arith.constant 0 : i32
    %c0_i32_1 = arith.constant 0 : i32
    return %arg0, %c0_i32, %c0_i32_0 : i32, i32, i32
  }
  func.func @transform_3(%arg0: i32, %arg1: i32) -> (i32, i32, i32) {
    %c0_i32 = arith.constant 0 : i32
    %c0_i32_0 = arith.constant 0 : i32
    %c0_i32_1 = arith.constant 0 : i32
    return %arg0, %c0_i32, %c0_i32_0 : i32, i32, i32
  }
  func.func @transform_4(%arg0: i32, %arg1: i32) -> (i32, i32, i32) {
    %c0_i32 = arith.constant 0 : i32
    %c0_i32_0 = arith.constant 0 : i32
    %c0_i32_1 = arith.constant 0 : i32
    return %arg0, %c0_i32, %c0_i32_0 : i32, i32, i32
  }
  func.func @transform_5(%arg0: i32, %arg1: i32) -> (i32, i32, i32) {
    %c0_i32 = arith.constant 0 : i32
    %c0_i32_0 = arith.constant 0 : i32
    return %arg0, %arg1, %c0_i32 : i32, i32, i32
  }
}

</mosaic_0001>

<llo_original>
// kernel: tpu_custom_call.1
$region0: #{tpu_custom_call.1}
  #allocation0 [shape = 'u32[]', space=smem, size = 0x4, offset = 0x4, fixed_abs, tag = 'smem constant byte address 0x4 - core index']
  #allocation1 [shape = 'u32[72,128]{1,0:T(1,128)}', space=vmem, size = 0x9000, scoped, tag = 'internal scratch']
  %s0 = inlined_call_operand.hbm [shape: f32[2,8,128], index: 0, kind: input, shape index: {}]
  %s1 = inlined_call_operand.hbm [shape: f32[2,128,128], index: 1, kind: input, shape index: {}]
  %s2 = inlined_call_operand.hbm [shape: f32[2,1,128], index: 2, kind: input, shape index: {}]
  %s3 = inlined_call_operand.hbm [shape: f32[2,128,128], index: 3, kind: input, shape index: {}]
  %s4 = inlined_call_operand.vmem [shape: f32[2,1,128], index: 4, kind: input, shape index: {}]
  %s5 = inlined_call_operand.hbm [shape: f32[2,8,128], index: 5, kind: output, shape index: {}]
  %s6 = sld [smem:[#allocation0]]
  $region69: #{tpu_custom_call.1} parent=0
    _
  %s8 = ssub.s32 1, %s6
  %s9 = scalar_select 0, %s8, %s6
  $region1: #{tpu_custom_call.1} parent=0
    #allocation2 [shape = 'u8[8192]{0}', space=vmem, size = 0x2000, scoped, tag = 'input window, operand 0']
    #allocation3 [shape = 's32[2]{0}', space=sflag, size = 0x8, scoped, tag = 'scoped memory for tpu_custom_call.1']
    #allocation4 [shape = 's32[2]{0}', space=sflag, size = 0x8, scoped, tag = 'scoped memory for tpu_custom_call.1']
    #allocation5 [shape = 'u8[131072]{0}', space=vmem, size = 0x20000, scoped, tag = 'input window, operand 1']
    #allocation6 [shape = 's32[2]{0}', space=sflag, size = 0x8, scoped, tag = 'scoped memory for tpu_custom_call.1']
    #allocation7 [shape = 'u8[1024]{0}', space=vmem, size = 0x400, scoped, tag = 'input window, operand 2']
    #allocation8 [shape = 'u8[131072]{0}', space=vmem, size = 0x20000, scoped, tag = 'input window, operand 3']
    #allocation9 [shape = 's32[2]{0}', space=sflag, size = 0x8, scoped, tag = 'scoped memory for tpu_custom_call.1']
    #allocation10 [shape = 'u8[8192]{0}', space=vmem, size = 0x2000, scoped, tag = 'output window, operand 0']
    %10 = vsyncpa [#allocation3], 0
    %s11 = scalar_lea.sflag [#allocation3], 1
    %12 = vsyncpa %s11, 0
    %13 = vsyncpa [#allocation6], 0
    %s14 = scalar_lea.sflag [#allocation6], 1
    %15 = vsyncpa %s14, 0
    %16 = vsyncpa [#allocation9], 0
    %s17 = scalar_lea.sflag [#allocation9], 1
    %18 = vsyncpa %s17, 0
    %19 = vsyncpa [#allocation4], 0
    %s20 = scalar_lea.sflag [#allocation4], 1
    %21 = vsyncpa %s20, 0
    loop: start=0, step=1, limit=4
    $region2: #{tpu_custom_call.1} parent=1 // loop_pre_header
      _
    $region3: #{tpu_custom_call.1} parent=1 // loop_header
      %s23 = sphi 0, %s27
      %p24 = scmp.ge.s32.totalorder %s23, 4
      %s30 = sphi 0, %s42
      %s31 = sphi 0, %s38
      %s32 = sphi 0, %s30
      %s33 = sphi 0, %s31
      %s34 = sphi 0, %s32
      %s35 = sphi 0, %s33
      %s47 = sphi 0, %s49
      %s50 = sphi 0, %s47
      %s51 = sphi 0, %s50
      %s67 = sphi 0, %s51
      %s73 = sphi 0, %s75
      %s76 = sphi 0, %s73
      %s77 = sphi 0, %s76
      %s93 = sphi 0, %s77
      %s99 = sphi 0, %s101
      %s102 = sphi 0, %s99
      %s103 = sphi 0, %s102
      %s119 = sphi 0, %s103
      %s125 = sphi 0, %s127
      %s128 = sphi 0, %s125
      %s129 = sphi 0, %s128
      %s145 = sphi 0, %s129
      %s151 = sphi 0, %s153
      %s154 = sphi 0, %s151
      %s155 = sphi 0, %s154
      %s171 = sphi 0, %s155
      %s179 = sphi 0, %s181
      %s182 = sphi 0, %s179
      %s183 = sphi 0, %s182
      %s199 = sphi 0, %s183
    $region4: #{tpu_custom_call.1} parent=1 // loop_header_branch
      %26 = sbr.rel (%p24) target = $region8
    $region5: #{tpu_custom_call.1} parent=1 // loop_body
      %s28 = ssub.s32 %s23, 1
      %s29 = ssub.s32 %s23, 2
      %s36 = sadd.s32 1, %s31
      %p37 = scmp.ge.s32.totalorder %s36, 1
      %s38 = scalar_select %p37, 0, %s36
      %s39 = sadd.s32 1, %s30
      %s40 = scalar_select %p37, %s39, %s30
      %p41 = scmp.ge.s32.totalorder %s40, 2
      %s42 = scalar_select %p41, 0, %s40
      %s43 = ssub.s32 %s30, %s42
      %s44 = ssub.s32 %s31, %s38
      %s45 = sor.u32 %s43, %s44
      %p46 = scmp.eq.s32.totalorder %s45, 0
      %s48 = sadd.s32 %s47, 1
      %s49 = scalar_select %p46, %s47, %s48
      %p52 = pneg %p46
      %p53 = scmp.eq.s32.totalorder %s23, 1
      %p54 = por %p52, %p53
      %p55 = scmp.ne.s32.totalorder %s47, %s50
      %p56 = scmp.eq.s32.totalorder %s23, 0
      %p57 = por %p55, %p56
      %p58 = scmp.ne.s32.totalorder %s47, %s50
      %p59 = scmp.eq.s32.totalorder %s28, 1
      %p60 = por %p58, %p59
      %p61 = scmp.ne.s32.totalorder %s50, %s51
      %p62 = scmp.eq.s32.totalorder %s28, 0
      %p63 = por %p61, %p62
      %p64 = scmp.ne.s32.totalorder %s50, %s51
      %p65 = scmp.eq.s32.totalorder %s29, 1
      %p66 = por %p64, %p65
      %p68 = scmp.ne.s32.totalorder %s51, %s67
      %p69 = scmp.eq.s32.totalorder %s29, 0
      %p70 = por %p68, %p69
      %s71 = ssub.s32 %s30, %s42
      %p72 = scmp.eq.s32.totalorder %s71, 0
      %s74 = sadd.s32 %s73, 1
      %s75 = scalar_select %p72, %s73, %s74
      %p78 = pneg %p72
      %p79 = scmp.eq.s32.totalorder %s23, 1
      %p80 = por %p78, %p79
      %p81 = scmp.ne.s32.totalorder %s73, %s76
      %p82 = scmp.eq.s32.totalorder %s23, 0
      %p83 = por %p81, %p82
      %p84 = scmp.ne.s32.totalorder %s73, %s76
      %p85 = scmp.eq.s32.totalorder %s28, 1
      %p86 = por %p84, %p85
      %p87 = scmp.ne.s32.totalorder %s76, %s77
      %p88 = scmp.eq.s32.totalorder %s28, 0
      %p89 = por %p87, %p88
      %p90 = scmp.ne.s32.totalorder %s76, %s77
      %p91 = scmp.eq.s32.totalorder %s29, 1
      %p92 = por %p90, %p91
      %p94 = scmp.ne.s32.totalorder %s77, %s93
      %p95 = scmp.eq.s32.totalorder %s29, 0
      %p96 = por %p94, %p95
      %s97 = ssub.s32 %s30, %s42
      %p98 = scmp.eq.s32.totalorder %s97, 0
      %s100 = sadd.s32 %s99, 1
      %s101 = scalar_select %p98, %s99, %s100
      %p104 = pneg %p98
      %p105 = scmp.eq.s32.totalorder %s23, 1
      %p106 = por %p104, %p105
      %p107 = scmp.ne.s32.totalorder %s99, %s102
      %p108 = scmp.eq.s32.totalorder %s23, 0
      %p109 = por %p107, %p108
      %p110 = scmp.ne.s32.totalorder %s99, %s102
      %p111 = scmp.eq.s32.totalorder %s28, 1
      %p112 = por %p110, %p111
      %p113 = scmp.ne.s32.totalorder %s102, %s103
      %p114 = scmp.eq.s32.totalorder %s28, 0
      %p115 = por %p113, %p114
      %p116 = scmp.ne.s32.totalorder %s102, %s103
      %p117 = scmp.eq.s32.totalorder %s29, 1
      %p118 = por %p116, %p117
      %p120 = scmp.ne.s32.totalorder %s103, %s119
      %p121 = scmp.eq.s32.totalorder %s29, 0
      %p122 = por %p120, %p121
      %s123 = ssub.s32 %s30, %s42
      %p124 = scmp.eq.s32.totalorder %s123, 0
      %s126 = sadd.s32 %s125, 1
      %s127 = scalar_select %p124, %s125, %s126
      %p130 = pneg %p124
      %p131 = scmp.eq.s32.totalorder %s23, 1
      %p132 = por %p130, %p131
      %p133 = scmp.ne.s32.totalorder %s125, %s128
      %p134 = scmp.eq.s32.totalorder %s23, 0
      %p135 = por %p133, %p134
      %p136 = scmp.ne.s32.totalorder %s125, %s128
      %p137 = scmp.eq.s32.totalorder %s28, 1
      %p138 = por %p136, %p137
      %p139 = scmp.ne.s32.totalorder %s128, %s129
      %p140 = scmp.eq.s32.totalorder %s28, 0
      %p141 = por %p139, %p140
      %p142 = scmp.ne.s32.totalorder %s128, %s129
      %p143 = scmp.eq.s32.totalorder %s29, 1
      %p144 = por %p142, %p143
      %p146 = scmp.ne.s32.totalorder %s129, %s145
      %p147 = scmp.eq.s32.totalorder %s29, 0
      %p148 = por %p146, %p147
      %s149 = ssub.s32 %s30, %s42
      %p150 = scmp.eq.s32.totalorder %s149, 0
      %s152 = sadd.s32 %s151, 1
      %s153 = scalar_select %p150, %s151, %s152
      %p156 = pneg %p150
      %p157 = scmp.eq.s32.totalorder %s23, 1
      %p158 = por %p156, %p157
      %p159 = scmp.ne.s32.totalorder %s151, %s154
      %p160 = scmp.eq.s32.totalorder %s23, 0
      %p161 = por %p159, %p160
      %p162 = scmp.ne.s32.totalorder %s151, %s154
      %p163 = scmp.eq.s32.totalorder %s28, 1
      %p164 = por %p162, %p163
      %p165 = scmp.ne.s32.totalorder %s154, %s155
      %p166 = scmp.eq.s32.totalorder %s28, 0
      %p167 = por %p165, %p166
      %p168 = scmp.ne.s32.totalorder %s154, %s155
      %p169 = scmp.eq.s32.totalorder %s29, 1
      %p170 = por %p168, %p169
      %p172 = scmp.ne.s32.totalorder %s155, %s171
      %p173 = scmp.eq.s32.totalorder %s29, 0
      %p174 = por %p172, %p173
      %s175 = ssub.s32 %s30, %s42
      %s176 = ssub.s32 %s31, %s38
      %s177 = sor.u32 %s175, %s176
      %p178 = scmp.eq.s32.totalorder %s177, 0
      %s180 = sadd.s32 %s179, 1
      %s181 = scalar_select %p178, %s179, %s180
      %p184 = pneg %p178
      %p185 = scmp.eq.s32.totalorder %s23, 1
      %p186 = por %p184, %p185
      %p187 = scmp.ne.s32.totalorder %s179, %s182
      %p188 = scmp.eq.s32.totalorder %s23, 0
      %p189 = por %p187, %p188
      %p190 = scmp.ne.s32.totalorder %s179, %s182
      %p191 = scmp.eq.s32.totalorder %s28, 1
      %p192 = por %p190, %p191
      %p193 = scmp.ne.s32.totalorder %s182, %s183
      %p194 = scmp.eq.s32.totalorder %s28, 0
      %p195 = por %p193, %p194
      %p196 = scmp.ne.s32.totalorder %s182, %s183
      %p197 = scmp.eq.s32.totalorder %s29, 1
      %p198 = por %p196, %p197
      %p200 = scmp.ne.s32.totalorder %s183, %s199
      %p201 = scmp.eq.s32.totalorder %s29, 0
      %p202 = por %p200, %p201
      %p203 = scmp.le.s32.totalorder 1, %s23
      %p204 = scmp.lt.s32.totalorder %s23, 3
      %p205 = pnand %p203, %p204
      %p206 = pneg %p205
      // Predicated region
      $region9: #{tpu_custom_call.1} parent=5 // pred_check
        _
      $region10: #{tpu_custom_call.1} parent=5 // pred_check_branch
        %208 = sbr.rel (%p205) target = $region12
      $region11: #{tpu_custom_call.1} parent=5 // pred_region
        %s209 = ssub.s32 %s23, 1
      $region12: #{tpu_custom_call.1} parent=5 // pred_fallthru
        _
      %p210 = scmp.lt.s32.totalorder %s23, 2
      // Predicated region
      $region13: #{tpu_custom_call.1} parent=5 // pred_check
        %p211 = pneg %p210
      $region14: #{tpu_custom_call.1} parent=5 // pred_check_branch
        %213 = sbr.rel (%p211) target = $region16
      $region15: #{tpu_custom_call.1} parent=5 // pred_region
        // Predicated region
        $region17: #{tpu_custom_call.1} parent=15 // pred_check
          %p214 = pneg %p57
        $region18: #{tpu_custom_call.1} parent=15 // pred_check_branch
          %216 = sbr.rel (%p214) target = $region20
        $region19: #{tpu_custom_call.1} parent=15 // pred_region
          %s217 = sand.u32 %s47, 1
          %s218 = scalar_lea.sflag [#allocation3], %s217
          %s219 = sand.u32 %s47, 1
          %s220 = smul.addr %s219, 8
          %s221 = scalar_lea.vmem [#allocation2], %s220
          %223 = vsyncadd %s218, 0
          %s224 = sadd.s32 %s31, %s30
          %s225 = smul.addr %s224, 8
          %s226 = scalar_lea.hbm %s0, %s225
          %s228 = sshll.u32 %s226, 4
          %s229 = int_to_ptr.hbm [resolvable:$true] %s228
          %s230 = sshll.u32 %s221, 4
          %s231 = int_to_ptr.vmem [resolvable:$true] %s230
          %233 = dma.hbm_to_vmem [thread:$0]  %s229, 128, %s231, %s218
        $region20: #{tpu_custom_call.1} parent=15 // pred_fallthru
          _
        // Predicated region
        $region21: #{tpu_custom_call.1} parent=15 // pred_check
          %p234 = pneg %p83
        $region22: #{tpu_custom_call.1} parent=15 // pred_check_branch
          %236 = sbr.rel (%p234) target = $region24
        $region23: #{tpu_custom_call.1} parent=15 // pred_region
          %s237 = sand.u32 %s23, 1
          %s238 = scalar_lea.sflag [#allocation6], %s237
          %s239 = sand.u32 %s73, 1
          %s240 = smul.addr %s239, 128
          %s241 = scalar_lea.vmem [#allocation5], %s240
          %243 = vsyncadd %s238, 0
          %s244 = smul.addr %s30, 16
          %s245 = smul.addr %s244, 8
          %s246 = scalar_lea.hbm %s1, %s245
          %s247 = sshll.u32 %s246, 4
          %s248 = int_to_ptr.hbm [resolvable:$true] %s247
          %s249 = sshll.u32 %s241, 4
          %s250 = int_to_ptr.vmem [resolvable:$true] %s249
          %255 = dma.hbm_to_vmem [thread:$0]  %s248, 2048, %s250, %s238, 128, 128, 8
        $region24: #{tpu_custom_call.1} parent=15 // pred_fallthru
          _
        // Predicated region
        $region25: #{tpu_custom_call.1} parent=15 // pred_check
          %p256 = pneg %p109
        $region26: #{tpu_custom_call.1} parent=15 // pred_check_branch
          %258 = sbr.rel (%p256) target = $region28
        $region27: #{tpu_custom_call.1} parent=15 // pred_region
          %s259 = sand.u32 %s23, 1
          %s260 = scalar_lea.sflag [#allocation6], %s259
          %s261 = sand.u32 %s99, 1
          %s262 = scalar_lea.vmem [#allocation7], %s261
          %264 = vsyncadd %s260, 0
          %s265 = scalar_lea.hbm %s2, %s30
          %s267 = sshll.u32 %s265, 4
          %s268 = int_to_ptr.hbm [resolvable:$true] %s267
          %s269 = sshll.u32 %s262, 4
          %s270 = int_to_ptr.vmem [resolvable:$true] %s269
          %272 = dma.hbm_to_vmem [thread:$0]  %s268, 16, %s270, %s260
        $region28: #{tpu_custom_call.1} parent=15 // pred_fallthru
          _
        // Predicated region
        $region29: #{tpu_custom_call.1} parent=15 // pred_check
          %p273 = pneg %p135
        $region30: #{tpu_custom_call.1} parent=15 // pred_check_branch
          %275 = sbr.rel (%p273) target = $region32
        $region31: #{tpu_custom_call.1} parent=15 // pred_region
          %s276 = sand.u32 %s125, 1
          %s277 = scalar_lea.sflag [#allocation9], %s276
          %s278 = sand.u32 %s125, 1
          %s279 = smul.addr %s278, 128
          %s280 = scalar_lea.vmem [#allocation8], %s279
          %282 = vsyncadd %s277, 0
          %s283 = smul.addr %s30, 16
          %s284 = smul.addr %s283, 8
          %s285 = scalar_lea.hbm %s3, %s284
          %s286 = sshll.u32 %s285, 4
          %s287 = int_to_ptr.hbm [resolvable:$true] %s286
          %s288 = sshll.u32 %s280, 4
          %s289 = int_to_ptr.vmem [resolvable:$true] %s288
          %294 = dma.hbm_to_vmem [thread:$0]  %s287, 2048, %s289, %s277, 128, 128, 8
        $region32: #{tpu_custom_call.1} parent=15 // pred_fallthru
          _
        // Predicated region
        $region33: #{tpu_custom_call.1} parent=15 // pred_check
          %p295 = pneg %p161
        $region34: #{tpu_custom_call.1} parent=15 // pred_check_branch
          %297 = sbr.rel (%p295) target = $region36
        $region35: #{tpu_custom_call.1} parent=15 // pred_region
          %p298 = scmp.lt.s32.totalorder %s30, 1
          %s299 = scalar_select %p298, %s30, 1
          %s300 = scalar_lea.vmem %s4, %s299
        $region36: #{tpu_custom_call.1} parent=15 // pred_fallthru
          _
      $region16: #{tpu_custom_call.1} parent=5 // pred_fallthru
        _
      %p301 = scmp.le.s32.totalorder 1, %s23
      %p302 = scmp.lt.s32.totalorder %s23, 3
      %p303 = pnand %p301, %p302
      %p304 = pneg %p303
      // Predicated region
      $region37: #{tpu_custom_call.1} parent=5 // pred_check
        _
      $region38: #{tpu_custom_call.1} parent=5 // pred_check_branch
        %306 = sbr.rel (%p303) target = $region40
      $region39: #{tpu_custom_call.1} parent=5 // pred_region
        %s307 = ssub.s32 %s23, 1
        %s308 = sand.u32 %s50, 1
        %s309 = scalar_lea.sflag [#allocation3], %s308
        %s310 = sand.u32 %s50, 1
        %s311 = smul.addr %s310, 8
        %s312 = scalar_lea.vmem [#allocation2], %s311
        // Predicated region
        $region41: #{tpu_custom_call.1} parent=39 // pred_check
          %p313 = pneg %p63
        $region42: #{tpu_custom_call.1} parent=39 // pred_check_branch
          %315 = sbr.rel (%p313) target = $region44
        $region43: #{tpu_custom_call.1} parent=39 // pred_region
          %317 = dma.done %s309, 128
        $region44: #{tpu_custom_call.1} parent=39 // pred_fallthru
          _
        %s318 = sand.u32 %s28, 1
        %s319 = scalar_lea.sflag [#allocation6], %s318
        %s320 = sand.u32 %s76, 1
        %s321 = smul.addr %s320, 128
        %s322 = scalar_lea.vmem [#allocation5], %s321
        // Predicated region
        $region45: #{tpu_custom_call.1} parent=39 // pred_check
          %p323 = pneg %p89
        $region46: #{tpu_custom_call.1} parent=39 // pred_check_branch
          %325 = sbr.rel (%p323) target = $region48
        $region47: #{tpu_custom_call.1} parent=39 // pred_region
          %327 = dma.done %s319, 2048
        $region48: #{tpu_custom_call.1} parent=39 // pred_fallthru
          _
        %s328 = sand.u32 %s28, 1
        %s329 = scalar_lea.sflag [#allocation6], %s328
        %s330 = sand.u32 %s102, 1
        %s331 = scalar_lea.vmem [#allocation7], %s330
        // Predicated region
        $region49: #{tpu_custom_call.1} parent=39 // pred_check
          %p332 = pneg %p115
        $region50: #{tpu_custom_call.1} parent=39 // pred_check_branch
          %334 = sbr.rel (%p332) target = $region52
        $region51: #{tpu_custom_call.1} parent=39 // pred_region
          %336 = dma.done %s329, 16
        $region52: #{tpu_custom_call.1} parent=39 // pred_fallthru
          _
        %s337 = sand.u32 %s128, 1
        %s338 = scalar_lea.sflag [#allocation9], %s337
        %s339 = sand.u32 %s128, 1
        %s340 = smul.addr %s339, 128
        %s341 = scalar_lea.vmem [#allocation8], %s340
        // Predicated region
        $region53: #{tpu_custom_call.1} parent=39 // pred_check
          %p342 = pneg %p141
        $region54: #{tpu_custom_call.1} parent=39 // pred_check_branch
          %344 = sbr.rel (%p342) target = $region56
        $region55: #{tpu_custom_call.1} parent=39 // pred_region
          %346 = dma.done %s338, 2048
        $region56: #{tpu_custom_call.1} parent=39 // pred_fallthru
          _
        %s347 = sand.u32 %s50, 1
        %s348 = scalar_lea.sflag [#allocation3], %s347
        %s349 = sand.u32 %s50, 1
        %s350 = smul.addr %s349, 8
        %s351 = scalar_lea.vmem [#allocation2], %s350
        %p352 = pneg %p63
        %p353 = pneg %p60
        %s354 = sand.u32 %s28, 1
        %s355 = scalar_lea.sflag [#allocation6], %s354
        %s356 = sand.u32 %s76, 1
        %s357 = smul.addr %s356, 128
        %s358 = scalar_lea.vmem [#allocation5], %s357
        %p359 = pneg %p89
        %p360 = pneg %p86
        %s361 = sand.u32 %s28, 1
        %s362 = scalar_lea.sflag [#allocation6], %s361
        %s363 = sand.u32 %s102, 1
        %s364 = scalar_lea.vmem [#allocation7], %s363
        %p365 = pneg %p115
        %p366 = pneg %p112
        %s367 = sand.u32 %s128, 1
        %s368 = scalar_lea.sflag [#allocation9], %s367
        %s369 = sand.u32 %s128, 1
        %s370 = smul.addr %s369, 128
        %s371 = scalar_lea.vmem [#allocation8], %s370
        %p372 = pneg %p141
        %p373 = pneg %p138
        %p374 = scmp.lt.s32.totalorder %s32, 1
        %s375 = scalar_select %p374, %s32, 1
        %s376 = scalar_lea.vmem %s4, %s375
        %p377 = pneg %p167
        %p378 = pneg %p164
        %p379 = pneg %p195
        %p380 = pneg %p192
        %s381 = sand.u32 %s182, 1
        %s382 = scalar_lea.sflag [#allocation4], %s381
        %s383 = sand.u32 %s182, 1
        %s384 = smul.addr %s383, 8
        %s385 = scalar_lea.vmem [#allocation10], %s384
        %p386 = scmp.lt.s32.totalorder %s32, 1
        %s387 = scalar_select %p386, %s32, 1
        %s388 = scalar_lea.vmem %s4, %s387
        %v389 = vld [vmem:[%s312] sm:$0xff]
        %v390 = vld [vmem:[%s322] sm:$0xff]
        %v391 = vld [vmem:[%s322 + $0x8] sm:$0xff]
        %v392 = vld [vmem:[%s322 + $0x10] sm:$0xff]
        %v393 = vld [vmem:[%s322 + $0x18] sm:$0xff]
        %v394 = vld [vmem:[%s322 + $0x20] sm:$0xff]
        %v395 = vld [vmem:[%s322 + $0x28] sm:$0xff]
        %v396 = vld [vmem:[%s322 + $0x30] sm:$0xff]
        %v397 = vld [vmem:[%s322 + $0x38] sm:$0xff]
        %v398 = vld [vmem:[%s322 + $0x40] sm:$0xff]
        %v399 = vld [vmem:[%s322 + $0x48] sm:$0xff]
        %v400 = vld [vmem:[%s322 + $0x50] sm:$0xff]
        %v401 = vld [vmem:[%s322 + $0x58] sm:$0xff]
        %v402 = vld [vmem:[%s322 + $0x60] sm:$0xff]
        %v403 = vld [vmem:[%s322 + $0x68] sm:$0xff]
        %v404 = vld [vmem:[%s322 + $0x70] sm:$0xff]
        %v405 = vld [vmem:[%s322 + $0x78] sm:$0xff]
        %v406 = vld [vmem:[%s331] sm:$0x1]
        %v408 = vperm.slane %v406, 0
        %410 = vmatpush.msra.mxu0 %v405
        %411 = vmatpush.msra.mxu0 %v404
        %412 = vmatpush.msra.mxu0 %v403
        %413 = vmatpush.msra.mxu0 %v402
        %414 = vmatpush.msra.mxu0 %v401
        %415 = vmatpush.msra.mxu0 %v400
        %416 = vmatpush.msra.mxu0 %v399
        %417 = vmatpush.msra.mxu0 %v398
        %418 = vmatpush.msra.mxu0 %v397
        %419 = vmatpush.msra.mxu0 %v396
        %420 = vmatpush.msra.mxu0 %v395
        %421 = vmatpush.msra.mxu0 %v394
        %422 = vmatpush.msra.mxu0 %v393
        %423 = vmatpush.msra.mxu0 %v392
        %424 = vmatpush.msra.mxu0 %v391
        %425 = vmatpush.msra.mxu0 %v390
        %426 = vmatmul.f32.gmra.mxu0 %v389
        %v427 = vpop.f32.mrf.mxu0
        %v428 = vadd.f32 %v408, %v427
        %429 = vdwg.mxu0
        %v430 = vmax.f32 %v428, 0.0
        %v431 = vld [vmem:[%s341] sm:$0xff]
        %v432 = vld [vmem:[%s341 + $0x8] sm:$0xff]
        %v433 = vld [vmem:[%s341 + $0x10] sm:$0xff]
        %v434 = vld [vmem:[%s341 + $0x18] sm:$0xff]
        %v435 = vld [vmem:[%s341 + $0x20] sm:$0xff]
        %v436 = vld [vmem:[%s341 + $0x28] sm:$0xff]
        %v437 = vld [vmem:[%s341 + $0x30] sm:$0xff]
        %v438 = vld [vmem:[%s341 + $0x38] sm:$0xff]
        %v439 = vld [vmem:[%s341 + $0x40] sm:$0xff]
        %v440 = vld [vmem:[%s341 + $0x48] sm:$0xff]
        %v441 = vld [vmem:[%s341 + $0x50] sm:$0xff]
        %v442 = vld [vmem:[%s341 + $0x58] sm:$0xff]
        %v443 = vld [vmem:[%s341 + $0x60] sm:$0xff]
        %v444 = vld [vmem:[%s341 + $0x68] sm:$0xff]
        %v445 = vld [vmem:[%s341 + $0x70] sm:$0xff]
        %v446 = vld [vmem:[%s341 + $0x78] sm:$0xff]
        %v447 = vld [vmem:[%s388] sm:$0x1]
        %v449 = vperm.slane %v447, 0
        %451 = vmatpush.msra.mxu0 %v446
        %452 = vmatpush.msra.mxu0 %v445
        %453 = vmatpush.msra.mxu0 %v444
        %454 = vmatpush.msra.mxu0 %v443
        %455 = vmatpush.msra.mxu0 %v442
        %456 = vmatpush.msra.mxu0 %v441
        %457 = vmatpush.msra.mxu0 %v440
        %458 = vmatpush.msra.mxu0 %v439
        %459 = vmatpush.msra.mxu0 %v438
        %460 = vmatpush.msra.mxu0 %v437
        %461 = vmatpush.msra.mxu0 %v436
        %462 = vmatpush.msra.mxu0 %v435
        %463 = vmatpush.msra.mxu0 %v434
        %464 = vmatpush.msra.mxu0 %v433
        %465 = vmatpush.msra.mxu0 %v432
        %466 = vmatpush.msra.mxu0 %v431
        %467 = vmatmul.f32.gmra.mxu0 %v430
        %v468 = vpop.f32.mrf.mxu0
        %v469 = vadd.f32 %v449, %v468
        %470 = vdwg.mxu0
        %471 = vst [vmem:[%s385] sm:$0xff] %v469
        %s472 = sand.u32 %s182, 1
        %s473 = scalar_lea.sflag [#allocation4], %s472
        %s474 = sand.u32 %s182, 1
        %s475 = smul.addr %s474, 8
        %s476 = scalar_lea.vmem [#allocation10], %s475
        // Predicated region
        $region57: #{tpu_custom_call.1} parent=39 // pred_check
          %p477 = pneg %p192
        $region58: #{tpu_custom_call.1} parent=39 // pred_check_branch
          %479 = sbr.rel (%p477) target = $region60
        $region59: #{tpu_custom_call.1} parent=39 // pred_region
          %481 = vsyncadd %s473, 0
          %s482 = sadd.s32 %s33, %s32
          %s483 = smul.addr %s482, 8
          %s484 = scalar_lea.hbm %s5, %s483
          %s486 = sshll.u32 %s476, 4
          %s487 = int_to_ptr.vmem [resolvable:$true] %s486
          %s488 = sshll.u32 %s484, 4
          %s489 = int_to_ptr.hbm [resolvable:$true] %s488
          %491 = dma.vmem_to_hbm [thread:$0]  %s487, 128, %s489, %s473
        $region60: #{tpu_custom_call.1} parent=39 // pred_fallthru
          _
      $region40: #{tpu_custom_call.1} parent=5 // pred_fallthru
        _
      %p492 = scmp.le.s32.totalorder 2, %s23
      // Predicated region
      $region61: #{tpu_custom_call.1} parent=5 // pred_check
        %p493 = pneg %p492
      $region62: #{tpu_custom_call.1} parent=5 // pred_check_branch
        %495 = sbr.rel (%p493) target = $region64
      $region63: #{tpu_custom_call.1} parent=5 // pred_region
        %s496 = ssub.s32 %s23, 2
        // Predicated region
        $region65: #{tpu_custom_call.1} parent=63 // pred_check
          %p497 = pneg %p198
        $region66: #{tpu_custom_call.1} parent=63 // pred_check_branch
          %499 = sbr.rel (%p497) target = $region68
        $region67: #{tpu_custom_call.1} parent=63 // pred_region
          %s500 = sand.u32 %s183, 1
          %s501 = scalar_lea.sflag [#allocation4], %s500
          %s502 = sand.u32 %s183, 1
          %s503 = smul.addr %s502, 8
          %s504 = scalar_lea.vmem [#allocation10], %s503
          %506 = dma.done %s501, 128
        $region68: #{tpu_custom_call.1} parent=63 // pred_fallthru
          _
      $region64: #{tpu_custom_call.1} parent=5 // pred_fallthru
        _
    $region6: #{tpu_custom_call.1} parent=1 // loop_footer
      %s27 = sadd.s32 1, %s23
    $region7: #{tpu_custom_call.1} parent=1 // loop_footer_branch
      %22 = sbr.rel target = $region3
    $region8: #{tpu_custom_call.1} parent=1 // loop_exit
      _
    %507 = vsyncpa [#allocation3], 1
    %s508 = scalar_lea.sflag [#allocation3], 1
    %509 = vsyncpa %s508, 1
    %510 = vsyncpa [#allocation6], 1
    %s511 = scalar_lea.sflag [#allocation6], 1
    %512 = vsyncpa %s511, 1
    %513 = vsyncpa [#allocation9], 1
    %s514 = scalar_lea.sflag [#allocation9], 1
    %515 = vsyncpa %s514, 1
    %516 = vsyncpa [#allocation4], 1
    %s517 = scalar_lea.sflag [#allocation4], 1
    %518 = vsyncpa %s517, 1

</llo_original>
